<compile_context>
chip_gen: v7x
topology: tpu7x:2x2x1
jax: 0.10.0
libtpu: 0.0.40
codegen_flags: <defaults>
</compile_context>

<pallas_src>
import functools

import jax
import jax.numpy as jnp
from jax.experimental import pallas as pl
from jax.experimental.pallas import tpu as pltpu


def _round_up(x, m):
    return ((x + m - 1) // m) * m


def _wmse_partial_kernel(pred_ref, target_ref, w_ref, out_ref, *, batch, tb):
    """One grid step: partial weighted sum-of-squares over a (tb, C, K) tile.

    w_ref holds the weight pre-scaled by 1/C (and 1/B for reduction='mean'),
    so the kernel does only adds/muls and the per-block partials just sum.
    """
    b = pl.program_id(0)

    pred = pred_ref[...].astype(jnp.float32)      # (tb, C, K)
    target = target_ref[...].astype(jnp.float32)  # (tb, C, K)
    diff = pred - target
    sq = diff * diff
    sum_c = jnp.sum(sq, axis=1)                   # (tb, K): sum over channels

    # Mask rows past the true batch size (last, possibly ragged, tile).  The
    # masked-out rows may contain garbage from the out-of-bounds DMA; using
    # jnp.where (select) keeps any NaN/Inf there from propagating.
    valid = jnp.minimum(batch - b * tb, tb)
    row_ids = jax.lax.broadcasted_iota(jnp.int32, sum_c.shape, 0)
    sum_c = jnp.where(row_ids < valid, sum_c, 0.0)

    w = w_ref[...]                                # (1, K), pre-scaled f32
    out_ref[...] = jnp.sum(sum_c * w).reshape(1, 1)


def weighted_mse_loss(pred, target, weight, reduction="mean", *, tb=None):
    """Pallas implementation of WeightedMSELoss.forward(pred, target, scale=None)."""
    assert pred.shape == target.shape
    assert pred.ndim == 3, "expected (B, C, K) inputs"
    B, C, K = pred.shape
    assert weight.shape == (K,) and K == 129

    # Fold all scalar divides into the weight on the host.
    if reduction == "mean":
        w_scaled = weight.astype(jnp.float32) / float(C * B)
    elif reduction == "sum":
        w_scaled = weight.astype(jnp.float32) / float(C)
    else:
        # TODO(synk): reduction='none' needs a (B,)-vector-output variant.
        raise NotImplementedError(f"unsupported reduction: {reduction!r}")
    w2d = w_scaled.reshape(1, K)  # keep 2-D for TPU layout; resident across grid

    # Pick a batch tile so (2 inputs x 2 pipeline buffers x tile) fits
    # comfortably in VMEM on every generation (v5e 16 MiB scoped default,
    # v7x 64 MiB physical), accounting for layout padding:
    #   K = 129 -> 256 lanes, C -> round_up(C, 8) sublanes.
    if tb is None:
        itemsize = jnp.dtype(pred.dtype).itemsize
        bytes_per_row = _round_up(C, 8) * _round_up(K, 128) * itemsize
        input_budget = 24 * 1024 * 1024          # for 2 inputs x 2 buffers
        tb = max(1, input_budget // (4 * bytes_per_row))
        tb = min(tb, B, 4096)
    num_blocks = pl.cdiv(B, tb)

    partials = pl.pallas_call(
        functools.partial(_wmse_partial_kernel, batch=B, tb=tb),
        out_shape=jax.ShapeDtypeStruct((num_blocks, 1), jnp.float32),
        grid=(num_blocks,),
        in_specs=[
            pl.BlockSpec((tb, C, K), lambda b: (b, 0, 0)),   # pred tile
            pl.BlockSpec((tb, C, K), lambda b: (b, 0, 0)),   # target tile
            pl.BlockSpec((1, K), lambda b: (0, 0)),          # weight, resident
        ],
        out_specs=pl.BlockSpec((1, 1), lambda b: (b, 0)),    # per-block partial
        compiler_params=pltpu.CompilerParams(
            dimension_semantics=(pltpu.PARALLEL,),           # v7x: split across TCs
            vmem_limit_bytes=48 * 1024 * 1024,
        ),
    )(pred, target, w2d)

    # Final reduction of the (tiny) per-block partials in plain JAX.
    return jnp.sum(partials)


def _reference(pred, target, weight, reduction="mean"):
    sq = jnp.square(pred - target)
    mc = jnp.mean(sq, axis=1).astype(jnp.float32)
    out = mc @ weight.astype(jnp.float32)
    return jnp.mean(out) if reduction == "mean" else jnp.sum(out)


if __name__ == "__main__":
    key = jax.random.PRNGKey(0)
    k1, k2, k3, k4 = jax.random.split(key, 4)

    K = 129  # module asserts len(weight) == 129
    weight = jnp.linspace(0.1, 1.0, K, dtype=jnp.float32)

    # Small canonical case (single block), reduction='mean'.
    B, C = 2, 4
    pred = jax.random.normal(k1, (B, C, K), dtype=jnp.float32)
    target = jax.random.normal(k2, (B, C, K), dtype=jnp.float32)
    loss = jax.block_until_ready(weighted_mse_loss(pred, target, weight, "mean"))
    ref = _reference(pred, target, weight, "mean")
    assert jnp.allclose(loss, ref, rtol=1e-5, atol=1e-5), (loss, ref)

    # Multi-block grid with a ragged last tile, reduction='sum'.
    B2, C2 = 10, 4
    pred2 = jax.random.normal(k3, (B2, C2, K), dtype=jnp.float32)
    target2 = jax.random.normal(k4, (B2, C2, K), dtype=jnp.float32)
    loss2 = jax.block_until_ready(
        weighted_mse_loss(pred2, target2, weight, "sum", tb=4))
    ref2 = _reference(pred2, target2, weight, "sum")
    assert jnp.allclose(loss2, ref2, rtol=1e-5, atol=1e-5), (loss2, ref2)

    print("KERNEL_OK")
</pallas_src>

<mosaic_0001>
module attributes {stable_mosaic.version = 11 : i64} {
  func.func @_wmse_partial_kernel(%arg0: i32, %arg1: memref<2x4x129xf32, #tpu.memory_space<vmem>>, %arg2: memref<2x4x129xf32, #tpu.memory_space<vmem>>, %arg3: memref<1x129xf32, #tpu.memory_space<vmem>>, %arg4: memref<1x1xf32, #tpu.memory_space<vmem>>) attributes {dimension_semantics = [#tpu.dimension_semantics<parallel>], iteration_bounds = array<i64: 1>, scalar_prefetch = 0 : i64, scratch_operands = 0 : i64, tpu.core_type = #tpu.core_type<tc>, window_params = [{transform_indices = @transform_0, window_bounds = array<i64: 2, 4, 129>}, {transform_indices = @transform_1, window_bounds = array<i64: 2, 4, 129>}, {pipeline_mode = #tpu.pipeline_mode<synchronous>, transform_indices = @transform_2, window_bounds = array<i64: 1, 129>}, {transform_indices = @transform_3, window_bounds = array<i64: 1, 1>}]} {
    %c0 = arith.constant 0 : index
    %c0_0 = arith.constant 0 : index
    %c0_1 = arith.constant 0 : index
    %0 = vector.load %arg1[%c0, %c0_0, %c0_1] : memref<2x4x129xf32, #tpu.memory_space<vmem>>, vector<2x4x129xf32>
    %c0_2 = arith.constant 0 : index
    %c0_3 = arith.constant 0 : index
    %c0_4 = arith.constant 0 : index
    %1 = vector.load %arg2[%c0_2, %c0_3, %c0_4] : memref<2x4x129xf32, #tpu.memory_space<vmem>>, vector<2x4x129xf32>
    %2 = arith.subf %0, %1 : vector<2x4x129xf32>
    %3 = arith.mulf %2, %2 : vector<2x4x129xf32>
    %cst = arith.constant dense<0.000000e+00> : vector<2x129xf32>
    %4 = vector.multi_reduction <add>, %3, %cst [1] : vector<2x4x129xf32> to vector<2x129xf32>
    %c2_i32 = arith.constant 2 : i32
    %5 = arith.muli %arg0, %c2_i32 : i32
    %c2_i32_5 = arith.constant 2 : i32
    %6 = arith.subi %c2_i32_5, %5 : i32
    %c2_i32_6 = arith.constant 2 : i32
    %7 = arith.minsi %6, %c2_i32_6 : i32
    %8 = tpu.iota {dimensions = array<i32: 0>} : vector<2x129xi32>
    %9 = vector.broadcast %7 : i32 to vector<2x129xi32>
    %10 = arith.cmpi slt, %8, %9 : vector<2x129xi32>
    %cst_7 = arith.constant 0.000000e+00 : f32
    %11 = vector.broadcast %cst_7 : f32 to vector<2x129xf32>
    %12 = arith.select %10, %4, %11 : vector<2x129xi1>, vector<2x129xf32>
    %c0_8 = arith.constant 0 : index
    %c0_9 = arith.constant 0 : index
    %13 = vector.load %arg3[%c0_8, %c0_9] : memref<1x129xf32, #tpu.memory_space<vmem>>, vector<1x129xf32>
    %14 = vector.broadcast %13 : vector<1x129xf32> to vector<2x129xf32>
    %15 = arith.mulf %12, %14 : vector<2x129xf32>
    %16 = vector.shape_cast %15 : vector<2x129xf32> to vector<1x2x129xf32>
    %cst_10 = arith.constant dense<0.000000e+00> : vector<1xf32>
    %17 = vector.multi_reduction <add>, %16, %cst_10 [1, 2] : vector<1x2x129xf32> to vector<1xf32>
    %18 = vector.shape_cast %17 : vector<1xf32> to vector<1x1x1xf32>
    %19 = vector.extract %18[0, 0, 0] : f32 from vector<1x1x1xf32>
    %20 = vector.broadcast %19 : f32 to vector<1x1xf32>
    %c0_11 = arith.constant 0 : index
    %c0_12 = arith.constant 0 : index
    %21 = vector.load %arg4[%c0_11, %c0_12] : memref<1x1xf32, #tpu.memory_space<vmem>>, vector<1x1xf32>
    tpu.vector_store %arg4[%c0_11, %c0_12], %20 {strides = array<i32>} : memref<1x1xf32, #tpu.memory_space<vmem>>, vector<1x1xf32>,
    return
  }
  func.func @transform_0(%arg0: i32) -> (i32, i32, i32) {
    %c0_i32 = arith.constant 0 : i32
    %c0_i32_0 = arith.constant 0 : i32
    %c0_i32_1 = arith.constant 0 : i32
    return %arg0, %c0_i32, %c0_i32_0 : i32, i32, i32
  }
  func.func @transform_1(%arg0: i32) -> (i32, i32, i32) {
    %c0_i32 = arith.constant 0 : i32
    %c0_i32_0 = arith.constant 0 : i32
    %c0_i32_1 = arith.constant 0 : i32
    return %arg0, %c0_i32, %c0_i32_0 : i32, i32, i32
  }
  func.func @transform_2(%arg0: i32) -> (i32, i32) {
    %c0_i32 = arith.constant 0 : i32
    %c0_i32_0 = arith.constant 0 : i32
    %c0_i32_1 = arith.constant 0 : i32
    return %c0_i32, %c0_i32_0 : i32, i32
  }
  func.func @transform_3(%arg0: i32) -> (i32, i32) {
    %c0_i32 = arith.constant 0 : i32
    %c0_i32_0 = arith.constant 0 : i32
    return %arg0, %c0_i32 : i32, i32
  }
}

</mosaic_0001>

<llo_original>
// kernel: tpu_custom_call.1
$region0: #{tpu_custom_call.1}
  #allocation0 [shape = 'u32[]', space=smem, size = 0x4, offset = 0x4, fixed_abs, tag = 'smem constant byte address 0x4 - core index']
  #allocation1 [shape = 'u32[144,128]{1,0:T(1,128)}', space=vmem, size = 0x12000, scoped, tag = 'internal scratch']
  %s0 = inlined_call_operand.hbm [shape: f32[2,4,129], index: 0, kind: input, shape index: {}]
  %s1 = inlined_call_operand.hbm [shape: f32[2,4,129], index: 1, kind: input, shape index: {}]
  %s2 = inlined_call_operand.vmem [shape: f32[1,129], index: 2, kind: input, shape index: {}]
  %s3 = inlined_call_operand.hbm [shape: f32[1,1], index: 3, kind: output, shape index: {}]
  %s4 = sld [smem:[#allocation0]]
  $region30: #{tpu_custom_call.1} parent=0
    _
  %s6 = ssub.s32 1, %s4
  %s7 = scalar_select 0, %s6, %s4
  $region1: #{tpu_custom_call.1} parent=0
    #allocation2 [shape = 'u8[8192]{0}', space=vmem, size = 0x2000, scoped, tag = 'input window, operand 0, single buffered']
    #allocation3 [shape = 's32[1]{0}', space=sflag, size = 0x4, scoped, tag = 'scoped memory for tpu_custom_call.1']
    #allocation4 [shape = 's32[1]{0}', space=sflag, size = 0x4, scoped, tag = 'scoped memory for tpu_custom_call.1']
    #allocation5 [shape = 'u8[8192]{0}', space=vmem, size = 0x2000, scoped, tag = 'input window, operand 1, single buffered']
    #allocation6 [shape = 's32[1]{0}', space=sflag, size = 0x4, scoped, tag = 'scoped memory for tpu_custom_call.1']
    #allocation7 [shape = 'u8[512]{0}', space=vmem, size = 0x400, scoped, tag = 'output window, operand 0, single buffered']
    %8 = vsyncpa [#allocation3], 0
    %9 = vsyncpa [#allocation6], 0
    %10 = vsyncpa [#allocation4], 0
    // Predicated region
    $region2: #{tpu_custom_call.1} parent=1 // pred_check
      _
    $region3: #{tpu_custom_call.1} parent=1 // pred_check_branch
      %12 = sbr.rel (0) target = $region5
    $region4: #{tpu_custom_call.1} parent=1 // pred_region
      %s14 = ssub.s32 256, 256
      %15 = vsyncadd [#allocation3], %s14
      %s16 = sshll.u32 [#allocation2], 4
      %s17 = int_to_ptr.vmem [resolvable:$true] %s16
      %22 = dma.hbm_to_vmem [thread:$0]  %s0, 256, %s17, [#allocation3], 128, 128, 8
    $region5: #{tpu_custom_call.1} parent=1 // pred_fallthru
      _
    // Predicated region
    $region6: #{tpu_custom_call.1} parent=1 // pred_check
      _
    $region7: #{tpu_custom_call.1} parent=1 // pred_check_branch
      %24 = sbr.rel (0) target = $region9
    $region8: #{tpu_custom_call.1} parent=1 // pred_region
      %s26 = ssub.s32 256, 256
      %27 = vsyncadd [#allocation6], %s26
      %s28 = sshll.u32 [#allocation5], 4
      %s29 = int_to_ptr.vmem [resolvable:$true] %s28
      %34 = dma.hbm_to_vmem [thread:$0]  %s1, 256, %s29, [#allocation6], 128, 128, 8
    $region9: #{tpu_custom_call.1} parent=1 // pred_fallthru
      _
    // Predicated region
    $region10: #{tpu_custom_call.1} parent=1 // pred_check
      _
    $region11: #{tpu_custom_call.1} parent=1 // pred_check_branch
      %36 = sbr.rel (0) target = $region13
    $region12: #{tpu_custom_call.1} parent=1 // pred_region
      _
    $region13: #{tpu_custom_call.1} parent=1 // pred_fallthru
      _
    // Predicated region
    $region14: #{tpu_custom_call.1} parent=1 // pred_check
      _
    $region15: #{tpu_custom_call.1} parent=1 // pred_check_branch
      %38 = sbr.rel (0) target = $region17
    $region16: #{tpu_custom_call.1} parent=1 // pred_region
      %39 = dma.done [#allocation3], 256
    $region17: #{tpu_custom_call.1} parent=1 // pred_fallthru
      _
    // Predicated region
    $region18: #{tpu_custom_call.1} parent=1 // pred_check
      _
    $region19: #{tpu_custom_call.1} parent=1 // pred_check_branch
      %41 = sbr.rel (0) target = $region21
    $region20: #{tpu_custom_call.1} parent=1 // pred_region
      %42 = dma.done [#allocation6], 256
    $region21: #{tpu_custom_call.1} parent=1 // pred_fallthru
      _
    %v43 = vld [vmem:[#allocation2] sm:$0xff]
    %v44 = vld [vmem:[#allocation2 + $0x8] sm:$0xff]
    %v45 = vld [vmem:[#allocation5] sm:$0xff]
    %v46 = vld [vmem:[#allocation5 + $0x8] sm:$0xff]
    %v47 = vsub.f32 %v43, %v45
    %v48 = vsub.f32 %v44, %v46
    %v49 = vmul.f32 %v47, %v47
    %v50 = vmul.f32 %v48, %v48
    %v53 = vcombine.high %v49, %v49
    %v54 = vcombine.high %v50, %v50
    %vm57 = vcmask 1043456
    %v58 = vsel %vm57, %v49, 0.0
    %v59 = vrot.slane %v58, 4
    %v60 = vadd.f32 %v58, %v59
    %v61 = vrot.slane %v60, 2
    %v62 = vadd.f32 %v60, %v61
    %v63 = vrot.slane %v62, 1
    %v64 = vadd.f32 %v62, %v63
    %vm65 = vcmask 3072
    %v66 = vsel %vm65, %v53, 0.0
    %v67 = vrot.slane %v66, 4
    %v68 = vadd.f32 %v66, %v67
    %v69 = vrot.slane %v68, 2
    %v70 = vadd.f32 %v68, %v69
    %v71 = vrot.slane %v70, 1
    %v72 = vadd.f32 %v70, %v71
    %v73 = vsel %vm57, %v50, 0.0
    %v74 = vrot.slane %v73, 4
    %v75 = vadd.f32 %v73, %v74
    %v76 = vrot.slane %v75, 2
    %v77 = vadd.f32 %v75, %v76
    %v78 = vrot.slane %v77, 1
    %v79 = vadd.f32 %v77, %v78
    %v80 = vsel %vm65, %v54, 0.0
    %v81 = vrot.slane %v80, 4
    %v82 = vadd.f32 %v80, %v81
    %v83 = vrot.slane %v82, 2
    %v84 = vadd.f32 %v82, %v83
    %v85 = vrot.slane %v84, 1
    %v86 = vadd.f32 %v84, %v85
    %s87 = smul.u32 0, 2
    %s88 = ssub.s32 2, %s87
    %p89 = scmp.lt.s32.totalorder %s88, 2
    %s90 = scalar_select %p89, %s88, 2
    %v91 = vlaneseq
    %v92 = vshrl.u32 %v91, 7
    %v93 = vstv %s90
    %vm94 = vcmp.lt.s32.totalorder %v92, %v93
    %vm99 = vcmask 1041409
    %v100 = vsel %vm99, %v79, %v64
    %v101 = vsel %vm99, %v86, %v72
    %v104 = vsel %vm94, %v100, 0.0
    %v105 = vsel %vm94, %v101, 0.0
    %v106 = vld [vmem:[%s2] sm:$0x3]
    %v108 = vlaneseq
    %v109 = vshrl.u32 %v108, 7
    %v110 = vsub.s32 0, %v109
    %v111 = vrot.slane %v106, %v110
    %v112 = vlaneseq
    %v113 = vshrl.u32 %v112, 7
    %v114 = vsub.s32 1, %v113
    %v115 = vrot.slane %v106, %v114
    %v118 = vmul.f32 %v104, %v111
    %v119 = vmul.f32 %v105, %v115
    %vm120 = vcmask 1041408
    %v121 = vsel %vm120, %v118, 0.0
    %vm122 = vcmask 1024
    %v123 = vsel %vm122, %v119, 0.0
    %v124 = vadd.f32 %v121, %v123
    %125 = vadd.xlane.f32.xlu0 %v124
    %v126 = vpop.xlane.xlu0 %125
    %v127 = vrot.slane %v126, 4
    %v128 = vadd.f32 %v126, %v127
    %v129 = vrot.slane %v128, 2
    %v130 = vadd.f32 %v128, %v129
    %v131 = vrot.slane %v130, 1
    %v132 = vadd.f32 %v130, %v131
    %s133 = vtos %v132
    %v134 = vstv %s133
    %vm135 = vcmask 0
    %136 = vst.msk [vmem:[#allocation7] sm:$0x1] %vm135, %v134
    // Predicated region
    $region22: #{tpu_custom_call.1} parent=1 // pred_check
      _
    $region23: #{tpu_custom_call.1} parent=1 // pred_check_branch
      %138 = sbr.rel (0) target = $region25
    $region24: #{tpu_custom_call.1} parent=1 // pred_region
      %s140 = ssub.s32 16, 16
      %141 = vsyncadd [#allocation4], %s140
      %s143 = sshll.u32 [#allocation7], 4
      %s144 = int_to_ptr.vmem [resolvable:$true] %s143
      %146 = dma.vmem_to_hbm [thread:$0]  %s144, 16, %s3, [#allocation4]
    $region25: #{tpu_custom_call.1} parent=1 // pred_fallthru
      _
    // Predicated region
    $region26: #{tpu_custom_call.1} parent=1 // pred_check
      _
    $region27: #{tpu_custom_call.1} parent=1 // pred_check_branch
      %148 = sbr.rel (0) target = $region29
    $region28: #{tpu_custom_call.1} parent=1 // pred_region
      %149 = dma.done [#allocation4], 16
    $region29: #{tpu_custom_call.1} parent=1 // pred_fallthru
      _
    %150 = vsyncpa [#allocation3], 1
    %151 = vsyncpa [#allocation6], 1
    %152 = vsyncpa [#allocation4], 1

</llo_original>
